<compile_context>
chip_gen: v6e
topology: v6e:2x2x1
jax: 0.10.0
libtpu: 0.0.40
codegen_flags: <defaults>
</compile_context>

<pallas_src>
import jax
import jax.numpy as jnp
from jax.experimental import pallas as pl
from jax.experimental.pallas import tpu as pltpu


def _vq_kernel(x_ref, embed_ref, embed_t_ref, e2_ref, q_ref, ind_ref, err_ref):
    # x_ref:       (tm, dim)        f32 tile of flattened input rows
    # embed_ref:   (dim, n_embed)   f32 codebook, grid-resident
    # embed_t_ref: (n_embed, dim)   pre-transposed codebook, grid-resident
    # e2_ref:      (1, n_embed)     precomputed ||e||^2, grid-resident
    # q_ref:       (tm, dim)        quantized rows
    # ind_ref:     (tm, 1)          int32 codebook indices
    # err_ref:     (tm, 1)          per-row squared error (sum over dim)
    x = x_ref[...]                                            # (tm, dim)
    e = embed_ref[...]                                        # (dim, n_embed)
    et = embed_t_ref[...]                                     # (n_embed, dim)
    e2 = e2_ref[...]                                          # (1, n_embed)

    x2 = jnp.sum(x * x, axis=1, keepdims=True)                # (tm, 1)
    xe = jnp.dot(x, e, preferred_element_type=jnp.float32)    # (tm, n_embed) MXU
    dist = x2 - 2.0 * xe + e2                                 # (tm, n_embed)

    n_embed = dist.shape[1]
    col = jax.lax.broadcasted_iota(jnp.int32, dist.shape, 1)  # (tm, n_embed)

    # first-occurrence argmin (matches torch.max(-dist) index semantics)
    min_val = jnp.min(dist, axis=1, keepdims=True)            # (tm, 1)
    cand = jnp.where(dist == min_val, col, n_embed)
    ind = jnp.min(cand, axis=1, keepdims=True)                # (tm, 1) int32

    # one-hot @ embed.T does the gather on the MXU (exact: 0/1 selection)
    onehot = (col == ind).astype(x.dtype)                     # (tm, n_embed)
    q = jnp.dot(onehot, et, preferred_element_type=jnp.float32)  # (tm, dim)

    q_ref[...] = q.astype(q_ref.dtype)
    ind_ref[...] = ind.astype(jnp.int32)
    # The squared error to the chosen code IS the min distance; clamp at 0
    # because x^2 - 2xe + e^2 can go slightly negative from cancellation.
    err_ref[...] = jnp.maximum(min_val, 0.0)


def _round_up(v, m):
    return ((v + m - 1) // m) * m


def vector_quantize(x, embed, *, tm=512):
    """x: (..., dim) float32, embed: (dim, n_embed) float32.

    Returns (quantize, diff, embed_ind) with the same semantics as the
    PyTorch module's forward (eval mode).
    """
    dim, n_embed = embed.shape
    assert x.shape[-1] == dim
    lead_shape = x.shape[:-1]
    flat = x.reshape(-1, dim).astype(jnp.float32)
    n = flat.shape[0]

    # Tile must be a multiple of 8 (sublane); clamp so tiny inputs don't
    # over-pad a 512-row default tile.
    tm = max(8, _round_up(min(tm, _round_up(n, 8)), 8))
    num_tiles = pl.cdiv(n, tm)
    n_pad = num_tiles * tm
    if n_pad != n:
        flat = jnp.pad(flat, ((0, n_pad - n), (0, 0)))

    # Codebook-invariant work hoisted out of the grid loop (once per call).
    embed = embed.astype(jnp.float32)
    embed_t = embed.T                                      # (n_embed, dim)
    e2 = jnp.sum(embed * embed, axis=0, keepdims=True)     # (1, n_embed)

    itemsize = 4
    cost = pl.CostEstimate(
        flops=4 * n_pad * dim * n_embed + 4 * n_pad * n_embed,
        transcendentals=0,
        bytes_accessed=itemsize * (2 * n_pad * dim + 2 * dim * n_embed
                                   + n_embed + 2 * n_pad),
    )

    q_flat, ind_flat, err_flat = pl.pallas_call(
        _vq_kernel,
        out_shape=(
            jax.ShapeDtypeStruct((n_pad, dim), jnp.float32),
            jax.ShapeDtypeStruct((n_pad, 1), jnp.int32),
            jax.ShapeDtypeStruct((n_pad, 1), jnp.float32),
        ),
        grid_spec=pltpu.PrefetchScalarGridSpec(
            num_scalar_prefetch=0,
            grid=(num_tiles,),
            in_specs=[
                pl.BlockSpec((tm, dim), lambda i: (i, 0)),
                pl.BlockSpec((dim, n_embed), lambda i: (0, 0)),
                pl.BlockSpec((n_embed, dim), lambda i: (0, 0)),
                pl.BlockSpec((1, n_embed), lambda i: (0, 0)),
            ],
            out_specs=[
                pl.BlockSpec((tm, dim), lambda i: (i, 0)),
                pl.BlockSpec((tm, 1), lambda i: (i, 0)),
                pl.BlockSpec((tm, 1), lambda i: (i, 0)),
            ],
        ),
        compiler_params=pltpu.CompilerParams(
            dimension_semantics=("parallel",),
            vmem_limit_bytes=32 * 1024 * 1024,
        ),
        cost_estimate=cost,
    )(flat, embed, embed_t, e2)

    quantize = q_flat[:n].reshape(*lead_shape, dim).astype(x.dtype)
    embed_ind = ind_flat[:n, 0].reshape(lead_shape)
    # diff = ((q - x)**2).sum(-1).sum(-1): per-row err already sums over dim,
    # so sum the remaining innermost leading axis.
    diff = err_flat[:n, 0].reshape(lead_shape).sum(axis=-1)
    return quantize, diff, embed_ind


def _reference(x, embed):
    dim, n_embed = embed.shape
    flat = x.reshape(-1, dim)
    dist = (
        jnp.sum(flat**2, axis=1, keepdims=True)
        - 2.0 * flat @ embed
        + jnp.sum(embed**2, axis=0, keepdims=True)
    )
    ind = jnp.argmin(dist, axis=1)
    q = embed.T[ind].reshape(x.shape)
    diff = jnp.sum((q - x) ** 2, axis=-1).sum(axis=-1)
    return q, diff, ind.reshape(x.shape[:-1])


if __name__ == "__main__":
    key = jax.random.PRNGKey(0)
    k_embed, k_x = jax.random.split(key)

    dim, n_embed = 32, 64
    B, H, W = 2, 4, 8                       # 64 flattened rows

    embed = jax.random.normal(k_embed, (dim, n_embed), dtype=jnp.float32)
    x = jax.random.normal(k_x, (B, H, W, dim), dtype=jnp.float32)

    q_ref, diff_ref, ind_ref = _reference(x, embed)

    # Default (large) tile: wrapper clamps tm to the 8-aligned row count.
    q, diff, ind = vector_quantize(x, embed)
    jax.block_until_ready((q, diff, ind))
    assert q.shape == (B, H, W, dim) and diff.shape == (B, H) and ind.shape == (B, H, W)
    assert jnp.allclose(q, q_ref, atol=1e-5, rtol=1e-5)
    assert jnp.allclose(diff, diff_ref, rtol=1e-3, atol=0.5)
    assert jnp.array_equal(ind, ind_ref.astype(jnp.int32))

    # Non-dividing tile: exercises the pl.cdiv grid + wrapper-side zero padding.
    q2, diff2, ind2 = vector_quantize(x, embed, tm=24)
    jax.block_until_ready((q2, diff2, ind2))
    assert jnp.allclose(q2, q_ref, atol=1e-5, rtol=1e-5)
    assert jnp.allclose(diff2, diff_ref, rtol=1e-3, atol=0.5)
    assert jnp.array_equal(ind2, ind_ref.astype(jnp.int32))

    print("KERNEL_OK")
</pallas_src>

<mosaic_0001>
module attributes {stable_mosaic.version = 11 : i64} {
  func.func @_vq_kernel(%arg0: i32, %arg1: memref<64x32xf32, #tpu.memory_space<vmem>>, %arg2: memref<32x64xf32, #tpu.memory_space<vmem>>, %arg3: memref<64x32xf32, #tpu.memory_space<vmem>>, %arg4: memref<1x64xf32, #tpu.memory_space<vmem>>, %arg5: memref<64x32xf32, #tpu.memory_space<vmem>>, %arg6: memref<64x1xi32, #tpu.memory_space<vmem>>, %arg7: memref<64x1xf32, #tpu.memory_space<vmem>>) attributes {dimension_semantics = [#tpu.dimension_semantics<parallel>], iteration_bounds = array<i64: 1>, scalar_prefetch = 0 : i64, scratch_operands = 0 : i64, tpu.core_type = #tpu.core_type<tc>, window_params = [{transform_indices = @transform_0, window_bounds = array<i64: 64, 32>}, {pipeline_mode = #tpu.pipeline_mode<synchronous>, transform_indices = @transform_1, window_bounds = array<i64: 32, 64>}, {pipeline_mode = #tpu.pipeline_mode<synchronous>, transform_indices = @transform_2, window_bounds = array<i64: 64, 32>}, {pipeline_mode = #tpu.pipeline_mode<synchronous>, transform_indices = @transform_3, window_bounds = array<i64: 1, 64>}, {transform_indices = @transform_4, window_bounds = array<i64: 64, 32>}, {transform_indices = @transform_5, window_bounds = array<i64: 64, 1>}, {transform_indices = @transform_6, window_bounds = array<i64: 64, 1>}]} {
    %c0 = arith.constant 0 : index
    %c0_0 = arith.constant 0 : index
    %0 = vector.load %arg1[%c0, %c0_0] : memref<64x32xf32, #tpu.memory_space<vmem>>, vector<64x32xf32>
    %c0_1 = arith.constant 0 : index
    %c0_2 = arith.constant 0 : index
    %1 = vector.load %arg2[%c0_1, %c0_2] : memref<32x64xf32, #tpu.memory_space<vmem>>, vector<32x64xf32>
    %c0_3 = arith.constant 0 : index
    %c0_4 = arith.constant 0 : index
    %2 = vector.load %arg3[%c0_3, %c0_4] : memref<64x32xf32, #tpu.memory_space<vmem>>, vector<64x32xf32>
    %c0_5 = arith.constant 0 : index
    %c0_6 = arith.constant 0 : index
    %3 = vector.load %arg4[%c0_5, %c0_6] : memref<1x64xf32, #tpu.memory_space<vmem>>, vector<1x64xf32>
    %4 = arith.mulf %0, %0 : vector<64x32xf32>
    %cst = arith.constant dense<0.000000e+00> : vector<64xf32>
    %5 = vector.multi_reduction <add>, %4, %cst [1] : vector<64x32xf32> to vector<64xf32>
    %6 = vector.shape_cast %5 : vector<64xf32> to vector<64x1xf32>
    %cst_7 = arith.constant dense<0.000000e+00> : vector<64x64xf32>
    %7 = tpu.matmul %0, %1, %cst_7 {dimension_numbers = #tpu.dot_dimension_numbers<[1], [0], [0], [1], [0, 0, 1, 1], [], []>} : vector<64x32xf32>, vector<32x64xf32>, vector<64x64xf32> -> vector<64x64xf32>
    %cst_8 = arith.constant 2.000000e+00 : f32
    %8 = vector.broadcast %cst_8 : f32 to vector<64x64xf32>
    %9 = arith.mulf %8, %7 : vector<64x64xf32>
    %10 = vector.broadcast %6 : vector<64x1xf32> to vector<64x64xf32>
    %11 = arith.subf %10, %9 : vector<64x64xf32>
    %12 = vector.broadcast %3 : vector<1x64xf32> to vector<64x64xf32>
    %13 = arith.addf %11, %12 : vector<64x64xf32>
    %14 = tpu.iota {dimensions = array<i32: 1>} : vector<64x64xi32>
    %cst_9 = arith.constant dense<0x7F800000> : vector<64xf32>
    %15 = vector.multi_reduction <minimumf>, %13, %cst_9 [1] : vector<64x64xf32> to vector<64xf32>
    %16 = vector.shape_cast %15 : vector<64xf32> to vector<64x1xf32>
    %17 = vector.broadcast %16 : vector<64x1xf32> to vector<64x64xf32>
    %18 = arith.cmpf oeq, %13, %17 : vector<64x64xf32>
    %c64_i32 = arith.constant 64 : i32
    %19 = vector.broadcast %c64_i32 : i32 to vector<64x64xi32>
    %20 = arith.select %18, %14, %19 : vector<64x64xi1>, vector<64x64xi32>
    %cst_10 = arith.constant dense<2147483647> : vector<64xi32>
    %21 = vector.multi_reduction <minsi>, %20, %cst_10 [1] : vector<64x64xi32> to vector<64xi32>
    %22 = vector.shape_cast %21 : vector<64xi32> to vector<64x1xi32>
    %23 = vector.broadcast %22 : vector<64x1xi32> to vector<64x64xi32>
    %24 = arith.cmpi eq, %14, %23 : vector<64x64xi32>
    %25 = arith.extui %24 : vector<64x64xi1> to vector<64x64xi32>
    %26 = arith.sitofp %25 : vector<64x64xi32> to vector<64x64xf32>
    %cst_11 = arith.constant dense<0.000000e+00> : vector<64x32xf32>
    %27 = tpu.matmul %26, %2, %cst_11 {dimension_numbers = #tpu.dot_dimension_numbers<[1], [0], [0], [1], [0, 0, 1, 1], [], []>} : vector<64x64xf32>, vector<64x32xf32>, vector<64x32xf32> -> vector<64x32xf32>
    %c0_12 = arith.constant 0 : index
    %c0_13 = arith.constant 0 : index
    %28 = vector.load %arg5[%c0_12, %c0_13] : memref<64x32xf32, #tpu.memory_space<vmem>>, vector<64x32xf32>
    tpu.vector_store %arg5[%c0_12, %c0_13], %27 {strides = array<i32>} : memref<64x32xf32, #tpu.memory_space<vmem>>, vector<64x32xf32>,
    %c0_14 = arith.constant 0 : index
    %c0_15 = arith.constant 0 : index
    %29 = vector.load %arg6[%c0_14, %c0_15] : memref<64x1xi32, #tpu.memory_space<vmem>>, vector<64x1xi32>
    tpu.vector_store %arg6[%c0_14, %c0_15], %22 {strides = array<i32>} : memref<64x1xi32, #tpu.memory_space<vmem>>, vector<64x1xi32>,
    %cst_16 = arith.constant 0.000000e+00 : f32
    %30 = vector.broadcast %cst_16 : f32 to vector<64x1xf32>
    %31 = arith.maximumf %16, %30 : vector<64x1xf32>
    %c0_17 = arith.constant 0 : index
    %c0_18 = arith.constant 0 : index
    %32 = vector.load %arg7[%c0_17, %c0_18] : memref<64x1xf32, #tpu.memory_space<vmem>>, vector<64x1xf32>
    tpu.vector_store %arg7[%c0_17, %c0_18], %31 {strides = array<i32>} : memref<64x1xf32, #tpu.memory_space<vmem>>, vector<64x1xf32>,
    return
  }
  func.func @transform_0(%arg0: i32) -> (i32, i32) {
    %c0_i32 = arith.constant 0 : i32
    %c0_i32_0 = arith.constant 0 : i32
    return %arg0, %c0_i32 : i32, i32
  }
  func.func @transform_1(%arg0: i32) -> (i32, i32) {
    %c0_i32 = arith.constant 0 : i32
    %c0_i32_0 = arith.constant 0 : i32
    %c0_i32_1 = arith.constant 0 : i32
    return %c0_i32, %c0_i32_0 : i32, i32
  }
  func.func @transform_2(%arg0: i32) -> (i32, i32) {
    %c0_i32 = arith.constant 0 : i32
    %c0_i32_0 = arith.constant 0 : i32
    %c0_i32_1 = arith.constant 0 : i32
    return %c0_i32, %c0_i32_0 : i32, i32
  }
  func.func @transform_3(%arg0: i32) -> (i32, i32) {
    %c0_i32 = arith.constant 0 : i32
    %c0_i32_0 = arith.constant 0 : i32
    %c0_i32_1 = arith.constant 0 : i32
    return %c0_i32, %c0_i32_0 : i32, i32
  }
  func.func @transform_4(%arg0: i32) -> (i32, i32) {
    %c0_i32 = arith.constant 0 : i32
    %c0_i32_0 = arith.constant 0 : i32
    return %arg0, %c0_i32 : i32, i32
  }
  func.func @transform_5(%arg0: i32) -> (i32, i32) {
    %c0_i32 = arith.constant 0 : i32
    %c0_i32_0 = arith.constant 0 : i32
    return %arg0, %c0_i32 : i32, i32
  }
  func.func @transform_6(%arg0: i32) -> (i32, i32) {
    %c0_i32 = arith.constant 0 : i32
    %c0_i32_0 = arith.constant 0 : i32
    return %arg0, %c0_i32 : i32, i32
  }
}

</mosaic_0001>

<llo_original>
// kernel: tpu_custom_call.1
$region0: #{tpu_custom_call.1}
  #allocation0 [shape = 'u32[]', space=smem, size = 0x4, offset = 0x4, fixed_abs, tag = 'smem constant byte address 0x4 - core index']
  #allocation1 [shape = 'u32[144,128]{1,0:T(1,128)}', space=vmem, size = 0x12000, scoped, tag = 'internal scratch']
  %s0 = inlined_call_operand.vmem [shape: f32[64,32], index: 0, kind: input, shape index: {}]
  %s1 = inlined_call_operand.vmem [shape: f32[32,64], index: 1, kind: input, shape index: {}]
  %s2 = inlined_call_operand.vmem [shape: f32[64,32], index: 2, kind: input, shape index: {}]
  %s3 = inlined_call_operand.vmem [shape: f32[1,64], index: 3, kind: input, shape index: {}]
  %s4 = inlined_call_operand.vmem [shape: f32[64,32], index: 4, kind: output, shape index: {0}]
  %s5 = inlined_call_operand.vmem [shape: s32[64,1], index: 5, kind: output, shape index: {1}]
  %s6 = inlined_call_operand.vmem [shape: f32[64,1], index: 6, kind: output, shape index: {2}]
  %7 = xla_tuple %s4, %s5, %s6
  %s8 = sld [smem:[#allocation0]]
  $region42: #{tpu_custom_call.1} parent=0
    _
  %s10 = ssub.s32 1, %s8
  %s11 = scalar_select 0, %s10, %s8
  // Predicated region
  $region2: #{tpu_custom_call.1} parent=0 // pred_check
    _
  $region3: #{tpu_custom_call.1} parent=0 // pred_check_branch
    %13 = sbr.rel (0) target = $region5
  $region4: #{tpu_custom_call.1} parent=0 // pred_region
    _
  $region5: #{tpu_custom_call.1} parent=0 // pred_fallthru
    _
  // Predicated region
  $region6: #{tpu_custom_call.1} parent=0 // pred_check
    _
  $region7: #{tpu_custom_call.1} parent=0 // pred_check_branch
    %15 = sbr.rel (0) target = $region9
  $region8: #{tpu_custom_call.1} parent=0 // pred_region
    _
  $region9: #{tpu_custom_call.1} parent=0 // pred_fallthru
    _
  // Predicated region
  $region10: #{tpu_custom_call.1} parent=0 // pred_check
    _
  $region11: #{tpu_custom_call.1} parent=0 // pred_check_branch
    %17 = sbr.rel (0) target = $region13
  $region12: #{tpu_custom_call.1} parent=0 // pred_region
    _
  $region13: #{tpu_custom_call.1} parent=0 // pred_fallthru
    _
  // Predicated region
  $region14: #{tpu_custom_call.1} parent=0 // pred_check
    _
  $region15: #{tpu_custom_call.1} parent=0 // pred_check_branch
    %19 = sbr.rel (0) target = $region17
  $region16: #{tpu_custom_call.1} parent=0 // pred_region
    _
  $region17: #{tpu_custom_call.1} parent=0 // pred_fallthru
    _
  %v20 = vld [vmem:[%s0] sm:$0xff]
  %v21 = vld [vmem:[%s0 + $0x8] sm:$0xff]
  %v22 = vld [vmem:[%s0 + $0x10] sm:$0xff]
  %v23 = vld [vmem:[%s0 + $0x18] sm:$0xff]
  %v24 = vld [vmem:[%s0 + $0x20] sm:$0xff]
  %v25 = vld [vmem:[%s0 + $0x28] sm:$0xff]
  %v26 = vld [vmem:[%s0 + $0x30] sm:$0xff]
  %v27 = vld [vmem:[%s0 + $0x38] sm:$0xff]
  %v28 = vld [vmem:[%s1] sm:$0xff]
  %v29 = vld [vmem:[%s1 + $0x8] sm:$0xff]
  %v30 = vld [vmem:[%s1 + $0x10] sm:$0xff]
  %v31 = vld [vmem:[%s1 + $0x18] sm:$0xff]
  %v32 = vld [vmem:[%s2] sm:$0xff]
  %v33 = vld [vmem:[%s2 + $0x8] sm:$0xff]
  %v34 = vld [vmem:[%s2 + $0x10] sm:$0xff]
  %v35 = vld [vmem:[%s2 + $0x18] sm:$0xff]
  %v36 = vld [vmem:[%s2 + $0x20] sm:$0xff]
  %v37 = vld [vmem:[%s2 + $0x28] sm:$0xff]
  %v38 = vld [vmem:[%s2 + $0x30] sm:$0xff]
  %v39 = vld [vmem:[%s2 + $0x38] sm:$0xff]
  %v40 = vld [vmem:[%s3] sm:$0x1]
  %v41 = vmul.f32 %v20, %v20
  %v42 = vmul.f32 %v21, %v21
  %v43 = vmul.f32 %v22, %v22
  %v44 = vmul.f32 %v23, %v23
  %v45 = vmul.f32 %v24, %v24
  %v46 = vmul.f32 %v25, %v25
  %v47 = vmul.f32 %v26, %v26
  %v48 = vmul.f32 %v27, %v27
  %vm49 = vcmask 261120
  %v50 = vsel %vm49, %v41, 0.0
  %51 = vadd.xlane.f32.xlu0 %v50
  %v52 = vpop.xlane.xlu0 %51
  %v53 = vsel %vm49, %v42, 0.0
  %54 = vadd.xlane.f32.xlu0 %v53
  %v55 = vpop.xlane.xlu0 %54
  %v56 = vsel %vm49, %v43, 0.0
  %57 = vadd.xlane.f32.xlu0 %v56
  %v58 = vpop.xlane.xlu0 %57
  %v59 = vsel %vm49, %v44, 0.0
  %60 = vadd.xlane.f32.xlu0 %v59
  %v61 = vpop.xlane.xlu0 %60
  %v62 = vsel %vm49, %v45, 0.0
  %63 = vadd.xlane.f32.xlu0 %v62
  %v64 = vpop.xlane.xlu0 %63
  %v65 = vsel %vm49, %v46, 0.0
  %66 = vadd.xlane.f32.xlu0 %v65
  %v67 = vpop.xlane.xlu0 %66
  %v68 = vsel %vm49, %v47, 0.0
  %69 = vadd.xlane.f32.xlu0 %v68
  %v70 = vpop.xlane.xlu0 %69
  %v71 = vsel %vm49, %v48, 0.0
  %72 = vadd.xlane.f32.xlu0 %v71
  %v73 = vpop.xlane.xlu0 %72
  %v75 = vsel %vm49, %v20, 0
  %v78 = vsel %vm49, %v21, 0
  %v81 = vsel %vm49, %v22, 0
  %v84 = vsel %vm49, %v23, 0
  %v87 = vsel %vm49, %v24, 0
  %v90 = vsel %vm49, %v25, 0
  %v93 = vsel %vm49, %v26, 0
  %v96 = vsel %vm49, %v27, 0
  %98 = vmatprep.subr.mxu0 0.0
  %99 = vmatpush1.msra.mxu0 0.0
  %100 = vmatprep.subr.mxu0 0.0
  %101 = vmatpush1.msra.mxu0 0.0
  %102 = vmatprep.subr.mxu0 0.0
  %103 = vmatpush1.msra.mxu0 0.0
  %104 = vmatprep.subr.mxu0 0.0
  %105 = vmatpush1.msra.mxu0 0.0
  %106 = vmatprep.subr.mxu0 0.0
  %107 = vmatpush1.msra.mxu0 0.0
  %108 = vmatprep.subr.mxu0 0.0
  %109 = vmatpush1.msra.mxu0 0.0
  %110 = vmatprep.subr.mxu0 0.0
  %111 = vmatpush1.msra.mxu0 0.0
  %112 = vmatprep.subr.mxu0 0.0
  %113 = vmatpush1.msra.mxu0 0.0
  %114 = vmatprep.subr.mxu0 0.0
  %115 = vmatpush1.msra.mxu0 0.0
  %116 = vmatprep.subr.mxu0 0.0
  %117 = vmatpush1.msra.mxu0 0.0
  %118 = vmatprep.subr.mxu0 0.0
  %119 = vmatpush1.msra.mxu0 0.0
  %120 = vmatprep.subr.mxu0 0.0
  %121 = vmatpush1.msra.mxu0 0.0
  %122 = vmatprep.subr.mxu0 0.0
  %123 = vmatpush1.msra.mxu0 %v31
  %124 = vmatprep.subr.mxu0 0.0
  %125 = vmatpush1.msra.mxu0 %v30
  %126 = vmatprep.subr.mxu0 0.0
  %127 = vmatpush1.msra.mxu0 %v29
  %128 = vmatprep.subr.mxu0 0.0
  %129 = vmatpush1.msra.mxu0 %v28
  %130 = vmatprep.subr.mxu0 0.0
  %131 = vmatpush2.msra.mxu0 0.0
  %132 = vmatprep.subr.mxu0 0.0
  %133 = vmatpush2.msra.mxu0 0.0
  %134 = vmatprep.subr.mxu0 0.0
  %135 = vmatpush2.msra.mxu0 0.0
  %136 = vmatprep.subr.mxu0 0.0
  %137 = vmatpush2.msra.mxu0 0.0
  %138 = vmatprep.subr.mxu0 0.0
  %139 = vmatpush2.msra.mxu0 0.0
  %140 = vmatprep.subr.mxu0 0.0
  %141 = vmatpush2.msra.mxu0 0.0
  %142 = vmatprep.subr.mxu0 0.0
  %143 = vmatpush2.msra.mxu0 0.0
  %144 = vmatprep.subr.mxu0 0.0
  %145 = vmatpush2.msra.mxu0 0.0
  %146 = vmatprep.subr.mxu0 0.0
  %147 = vmatpush2.msra.mxu0 0.0
  %148 = vmatprep.subr.mxu0 0.0
  %149 = vmatpush2.msra.mxu0 0.0
  %150 = vmatprep.subr.mxu0 0.0
  %151 = vmatpush2.msra.mxu0 0.0
  %152 = vmatprep.subr.mxu0 0.0
  %153 = vmatpush2.msra.mxu0 0.0
  %154 = vmatprep.subr.mxu0 0.0
  %155 = vmatpush2.msra.mxu0 0.0
  %156 = vmatprep.subr.mxu0 0.0
  %157 = vmatpush2.msra.mxu0 0.0
  %158 = vmatprep.subr.mxu0 0.0
  %159 = vmatpush2.msra.mxu0 0.0
  %160 = vmatprep.subr.mxu0 0.0
  %161 = vmatpush2.msra.mxu0 0.0
  %162 = vmatprep.mubr.f32.mxu0 0.0
  %163 = vmatmul.mubr.f32.gmra.mxu0 %v75
  %v164 = vpop.f32.mrf.mxu0
  %v165 = vadd.f32 0.0, %v164
  %v166 = vpop.f32.mrf.mxu0
  %167 = vmatprep.mubr.f32.mxu0 0.0
  %168 = vmatmul.mubr.f32.gmra.mxu0 %v78
  %v169 = vpop.f32.mrf.mxu0
  %v170 = vadd.f32 0.0, %v169
  %v171 = vpop.f32.mrf.mxu0
  %172 = vmatprep.mubr.f32.mxu0 0.0
  %173 = vmatmul.mubr.f32.gmra.mxu0 %v81
  %v174 = vpop.f32.mrf.mxu0
  %v175 = vadd.f32 0.0, %v174
  %v176 = vpop.f32.mrf.mxu0
  %177 = vmatprep.mubr.f32.mxu0 0.0
  %178 = vmatmul.mubr.f32.gmra.mxu0 %v84
  %v179 = vpop.f32.mrf.mxu0
  %v180 = vadd.f32 0.0, %v179
  %v181 = vpop.f32.mrf.mxu0
  %182 = vmatprep.mubr.f32.mxu0 0.0
  %183 = vmatmul.mubr.f32.gmra.mxu0 %v87
  %v184 = vpop.f32.mrf.mxu0
  %v185 = vadd.f32 0.0, %v184
  %v186 = vpop.f32.mrf.mxu0
  %187 = vmatprep.mubr.f32.mxu0 0.0
  %188 = vmatmul.mubr.f32.gmra.mxu0 %v90
  %v189 = vpop.f32.mrf.mxu0
  %v190 = vadd.f32 0.0, %v189
  %v191 = vpop.f32.mrf.mxu0
  %192 = vmatprep.mubr.f32.mxu0 0.0
  %193 = vmatmul.mubr.f32.gmra.mxu0 %v93
  %v194 = vpop.f32.mrf.mxu0
  %v195 = vadd.f32 0.0, %v194
  %v196 = vpop.f32.mrf.mxu0
  %197 = vmatprep.mubr.f32.mxu0 0.0
  %198 = vmatmul.mubr.f32.gmra.mxu0 %v96
  %v199 = vpop.f32.mrf.mxu0
  %v200 = vadd.f32 0.0, %v199
  %v201 = vpop.f32.mrf.mxu0
  %202 = vdwg.mxu0
  %v203 = vmul.f32 %v165, 2.0
  %v204 = vmul.f32 %v170, 2.0
  %v205 = vmul.f32 %v175, 2.0
  %v206 = vmul.f32 %v180, 2.0
  %v207 = vmul.f32 %v185, 2.0
  %v208 = vmul.f32 %v190, 2.0
  %v209 = vmul.f32 %v195, 2.0
  %v210 = vmul.f32 %v200, 2.0
  %v211 = vsub.f32 %v52, %v203
  %v212 = vsub.f32 %v55, %v204
  %v213 = vsub.f32 %v58, %v205
  %v214 = vsub.f32 %v61, %v206
  %v215 = vsub.f32 %v64, %v207
  %v216 = vsub.f32 %v67, %v208
  %v217 = vsub.f32 %v70, %v209
  %v218 = vsub.f32 %v73, %v210
  %v220 = vlaneseq
  %v221 = vshrl.u32 %v220, 7
  %v222 = vsub.s32 0, %v221
  %v223 = vrot.slane %v40, %v222
  %v225 = vadd.f32 %v211, %v223
  %v226 = vadd.f32 %v212, %v223
  %v227 = vadd.f32 %v213, %v223
  %v228 = vadd.f32 %v214, %v223
  %v229 = vadd.f32 %v215, %v223
  %v230 = vadd.f32 %v216, %v223
  %v231 = vadd.f32 %v217, %v223
  %v232 = vadd.f32 %v218, %v223
  %v233 = vlaneseq
  %v234 = vand.u32 %v233, 127
  %vm235 = vcmask 523264
  %v236 = vsel %vm235, %v225, inf
  %237 = vmin.xlane.f32.xlu0 %v236
  %v238 = vpop.xlane.xlu0 %237
  %v239 = vsel %vm235, %v226, inf
  %240 = vmin.xlane.f32.xlu0 %v239
  %v241 = vpop.xlane.xlu0 %240
  %v242 = vsel %vm235, %v227, inf
  %243 = vmin.xlane.f32.xlu0 %v242
  %v244 = vpop.xlane.xlu0 %243
  %v245 = vsel %vm235, %v228, inf
  %246 = vmin.xlane.f32.xlu0 %v245
  %v247 = vpop.xlane.xlu0 %246
  %v248 = vsel %vm235, %v229, inf
  %249 = vmin.xlane.f32.xlu0 %v248
  %v250 = vpop.xlane.xlu0 %249
  %v251 = vsel %vm235, %v230, inf
  %252 = vmin.xlane.f32.xlu0 %v251
  %v253 = vpop.xlane.xlu0 %252
  %v254 = vsel %vm235, %v231, inf
  %255 = vmin.xlane.f32.xlu0 %v254
  %v256 = vpop.xlane.xlu0 %255
  %v257 = vsel %vm235, %v232, inf
  %258 = vmin.xlane.f32.xlu0 %v257
  %v259 = vpop.xlane.xlu0 %258
  %vm260 = vcmp.eq.f32.partialorder %v225, %v238
  %vm261 = vcmp.eq.f32.partialorder %v226, %v241
  %vm262 = vcmp.eq.f32.partialorder %v227, %v244
  %vm263 = vcmp.eq.f32.partialorder %v228, %v247
  %vm264 = vcmp.eq.f32.partialorder %v229, %v250
  %vm265 = vcmp.eq.f32.partialorder %v230, %v253
  %vm266 = vcmp.eq.f32.partialorder %v231, %v256
  %vm267 = vcmp.eq.f32.partialorder %v232, %v259
  %v268 = vsel %vm260, %v234, 64
  %v269 = vsel %vm261, %v234, 64
  %v270 = vsel %vm262, %v234, 64
  %v271 = vsel %vm263, %v234, 64
  %v272 = vsel %vm264, %v234, 64
  %v273 = vsel %vm265, %v234, 64
  %v274 = vsel %vm266, %v234, 64
  %v275 = vsel %vm267, %v234, 64
  %v276 = vsel %vm235, %v268, 2147483647
  %v277 = vand.u32 %v276, 65535
  %v278 = vshra.s32 %v276, 16
  %v279 = vcvt.s32.f32 %v277
  %v280 = vcvt.s32.f32 %v278
  %281 = vmin.xlane.f32.xlu0 %v280
  %v282 = vpop.xlane.xlu0 %281
  %vm283 = vcmp.eq.f32.partialorder %v280, %v282
  %v284 = vsel %vm283, %v279, inf
  %285 = vmin.xlane.f32.xlu0 %v284
  %v286 = vpop.xlane.xlu0 %285
  %v287 = vcvt.f32.s32 %v286
  %v288 = vcvt.f32.s32 %v282
  %v289 = vshll.u32 %v288, 16
  %v290 = vadd.s32 %v289, %v287
  %v291 = vsel %vm235, %v269, 2147483647
  %v292 = vand.u32 %v291, 65535
  %v293 = vshra.s32 %v291, 16
  %v294 = vcvt.s32.f32 %v292
  %v295 = vcvt.s32.f32 %v293
  %296 = vmin.xlane.f32.xlu0 %v295
  %v297 = vpop.xlane.xlu0 %296
  %vm298 = vcmp.eq.f32.partialorder %v295, %v297
  %v299 = vsel %vm298, %v294, inf
  %300 = vmin.xlane.f32.xlu0 %v299
  %v301 = vpop.xlane.xlu0 %300
  %v302 = vcvt.f32.s32 %v301
  %v303 = vcvt.f32.s32 %v297
  %v304 = vshll.u32 %v303, 16
  %v305 = vadd.s32 %v304, %v302
  %v306 = vsel %vm235, %v270, 2147483647
  %v307 = vand.u32 %v306, 65535
  %v308 = vshra.s32 %v306, 16
  %v309 = vcvt.s32.f32 %v307
  %v310 = vcvt.s32.f32 %v308
  %311 = vmin.xlane.f32.xlu0 %v310
  %v312 = vpop.xlane.xlu0 %311
  %vm313 = vcmp.eq.f32.partialorder %v310, %v312
  %v314 = vsel %vm313, %v309, inf
  %315 = vmin.xlane.f32.xlu0 %v314
  %v316 = vpop.xlane.xlu0 %315
  %v317 = vcvt.f32.s32 %v316
  %v318 = vcvt.f32.s32 %v312
  %v319 = vshll.u32 %v318, 16
  %v320 = vadd.s32 %v319, %v317
  %v321 = vsel %vm235, %v271, 2147483647
  %v322 = vand.u32 %v321, 65535
  %v323 = vshra.s32 %v321, 16
  %v324 = vcvt.s32.f32 %v322
  %v325 = vcvt.s32.f32 %v323
  %326 = vmin.xlane.f32.xlu0 %v325
  %v327 = vpop.xlane.xlu0 %326
  %vm328 = vcmp.eq.f32.partialorder %v325, %v327
  %v329 = vsel %vm328, %v324, inf
  %330 = vmin.xlane.f32.xlu0 %v329
  %v331 = vpop.xlane.xlu0 %330
  %v332 = vcvt.f32.s32 %v331
  %v333 = vcvt.f32.s32 %v327
  %v334 = vshll.u32 %v333, 16
  %v335 = vadd.s32 %v334, %v332
  %v336 = vsel %vm235, %v272, 2147483647
  %v337 = vand.u32 %v336, 65535
  %v338 = vshra.s32 %v336, 16
  %v339 = vcvt.s32.f32 %v337
  %v340 = vcvt.s32.f32 %v338
  %341 = vmin.xlane.f32.xlu0 %v340
  %v342 = vpop.xlane.xlu0 %341
  %vm343 = vcmp.eq.f32.partialorder %v340, %v342
  %v344 = vsel %vm343, %v339, inf
  %345 = vmin.xlane.f32.xlu0 %v344
  %v346 = vpop.xlane.xlu0 %345
  %v347 = vcvt.f32.s32 %v346
  %v348 = vcvt.f32.s32 %v342
  %v349 = vshll.u32 %v348, 16
  %v350 = vadd.s32 %v349, %v347
  %v351 = vsel %vm235, %v273, 2147483647
  %v352 = vand.u32 %v351, 65535
  %v353 = vshra.s32 %v351, 16
  %v354 = vcvt.s32.f32 %v352
  %v355 = vcvt.s32.f32 %v353
  %356 = vmin.xlane.f32.xlu0 %v355
  %v357 = vpop.xlane.xlu0 %356
  %vm358 = vcmp.eq.f32.partialorder %v355, %v357
  %v359 = vsel %vm358, %v354, inf
  %360 = vmin.xlane.f32.xlu0 %v359
  %v361 = vpop.xlane.xlu0 %360
  %v362 = vcvt.f32.s32 %v361
  %v363 = vcvt.f32.s32 %v357
  %v364 = vshll.u32 %v363, 16
  %v365 = vadd.s32 %v364, %v362
  %v366 = vsel %vm235, %v274, 2147483647
  %v367 = vand.u32 %v366, 65535
  %v368 = vshra.s32 %v366, 16
  %v369 = vcvt.s32.f32 %v367
  %v370 = vcvt.s32.f32 %v368
  %371 = vmin.xlane.f32.xlu0 %v370
  %v372 = vpop.xlane.xlu0 %371
  %vm373 = vcmp.eq.f32.partialorder %v370, %v372
  %v374 = vsel %vm373, %v369, inf
  %375 = vmin.xlane.f32.xlu0 %v374
  %v376 = vpop.xlane.xlu0 %375
  %v377 = vcvt.f32.s32 %v376
  %v378 = vcvt.f32.s32 %v372
  %v379 = vshll.u32 %v378, 16
  %v380 = vadd.s32 %v379, %v377
  %v381 = vsel %vm235, %v275, 2147483647
  %v382 = vand.u32 %v381, 65535
  %v383 = vshra.s32 %v381, 16
  %v384 = vcvt.s32.f32 %v382
  %v385 = vcvt.s32.f32 %v383
  %386 = vmin.xlane.f32.xlu0 %v385
  %v387 = vpop.xlane.xlu0 %386
  %vm388 = vcmp.eq.f32.partialorder %v385, %v387
  %v389 = vsel %vm388, %v384, inf
  %390 = vmin.xlane.f32.xlu0 %v389
  %v391 = vpop.xlane.xlu0 %390
  %v392 = vcvt.f32.s32 %v391
  %v393 = vcvt.f32.s32 %v387
  %v394 = vshll.u32 %v393, 16
  %v395 = vadd.s32 %v394, %v392
  %vm396 = vcmp.eq.s32.totalorder %v234, %v290
  %vm397 = vcmp.eq.s32.totalorder %v234, %v305
  %vm398 = vcmp.eq.s32.totalorder %v234, %v320
  %vm399 = vcmp.eq.s32.totalorder %v234, %v335
  %vm400 = vcmp.eq.s32.totalorder %v234, %v350
  %vm401 = vcmp.eq.s32.totalorder %v234, %v365
  %vm402 = vcmp.eq.s32.totalorder %v234, %v380
  %vm403 = vcmp.eq.s32.totalorder %v234, %v395
  %v404 = vsel %vm396, 1, 0
  %v405 = vsel %vm397, 1, 0
  %v406 = vsel %vm398, 1, 0
  %v407 = vsel %vm399, 1, 0
  %v408 = vsel %vm400, 1, 0
  %v409 = vsel %vm401, 1, 0
  %v410 = vsel %vm402, 1, 0
  %v411 = vsel %vm403, 1, 0
  %v412 = vcvt.s32.f32 %v404
  %v413 = vcvt.s32.f32 %v405
  %v414 = vcvt.s32.f32 %v406
  %v415 = vcvt.s32.f32 %v407
  %v416 = vcvt.s32.f32 %v408
  %v417 = vcvt.s32.f32 %v409
  %v418 = vcvt.s32.f32 %v410
  %v419 = vcvt.s32.f32 %v411
  %v421 = vsel %vm235, %v412, 0
  %v424 = vsel %vm235, %v413, 0
  %v427 = vsel %vm235, %v414, 0
  %v430 = vsel %vm235, %v415, 0
  %v433 = vsel %vm235, %v416, 0
  %v436 = vsel %vm235, %v417, 0
  %v439 = vsel %vm235, %v418, 0
  %v442 = vsel %vm235, %v419, 0
  %444 = vmatprep.subr.mxu0 0.0
  %445 = vmatpush1.msra.mxu0 0.0
  %446 = vmatprep.subr.mxu0 0.0
  %447 = vmatpush1.msra.mxu0 0.0
  %448 = vmatprep.subr.mxu0 0.0
  %449 = vmatpush1.msra.mxu0 0.0
  %450 = vmatprep.subr.mxu0 0.0
  %451 = vmatpush1.msra.mxu0 0.0
  %452 = vmatprep.subr.mxu0 0.0
  %453 = vmatpush1.msra.mxu0 0.0
  %454 = vmatprep.subr.mxu0 0.0
  %455 = vmatpush1.msra.mxu0 0.0
  %456 = vmatprep.subr.mxu0 0.0
  %457 = vmatpush1.msra.mxu0 0.0
  %458 = vmatprep.subr.mxu0 0.0
  %459 = vmatpush1.msra.mxu0 0.0
  %460 = vmatprep.subr.mxu0 0.0
  %461 = vmatpush1.msra.mxu0 %v39
  %462 = vmatprep.subr.mxu0 0.0
  %463 = vmatpush1.msra.mxu0 %v38
  %464 = vmatprep.subr.mxu0 0.0
  %465 = vmatpush1.msra.mxu0 %v37
  %466 = vmatprep.subr.mxu0 0.0
  %467 = vmatpush1.msra.mxu0 %v36
  %468 = vmatprep.subr.mxu0 0.0
  %469 = vmatpush1.msra.mxu0 %v35
  %470 = vmatprep.subr.mxu0 0.0
  %471 = vmatpush1.msra.mxu0 %v34
  %472 = vmatprep.subr.mxu0 0.0
  %473 = vmatpush1.msra.mxu0 %v33
  %474 = vmatprep.subr.mxu0 0.0
  %475 = vmatpush1.msra.mxu0 %v32
  %476 = vmatprep.subr.mxu0 0.0
  %477 = vmatpush2.msra.mxu0 0.0
  %478 = vmatprep.subr.mxu0 0.0
  %479 = vmatpush2.msra.mxu0 0.0
  %480 = vmatprep.subr.mxu0 0.0
  %481 = vmatpush2.msra.mxu0 0.0
  %482 = vmatprep.subr.mxu0 0.0
  %483 = vmatpush2.msra.mxu0 0.0
  %484 = vmatprep.subr.mxu0 0.0
  %485 = vmatpush2.msra.mxu0 0.0
  %486 = vmatprep.subr.mxu0 0.0
  %487 = vmatpush2.msra.mxu0 0.0
  %488 = vmatprep.subr.mxu0 0.0
  %489 = vmatpush2.msra.mxu0 0.0
  %490 = vmatprep.subr.mxu0 0.0
  %491 = vmatpush2.msra.mxu0 0.0
  %492 = vmatprep.subr.mxu0 0.0
  %493 = vmatpush2.msra.mxu0 0.0
  %494 = vmatprep.subr.mxu0 0.0
  %495 = vmatpush2.msra.mxu0 0.0
  %496 = vmatprep.subr.mxu0 0.0
  %497 = vmatpush2.msra.mxu0 0.0
  %498 = vmatprep.subr.mxu0 0.0
  %499 = vmatpush2.msra.mxu0 0.0
  %500 = vmatprep.subr.mxu0 0.0
  %501 = vmatpush2.msra.mxu0 0.0
  %502 = vmatprep.subr.mxu0 0.0
  %503 = vmatpush2.msra.mxu0 0.0
  %504 = vmatprep.subr.mxu0 0.0
  %505 = vmatpush2.msra.mxu0 0.0
  %506 = vmatprep.subr.mxu0 0.0
  %507 = vmatpush2.msra.mxu0 0.0
  %508 = vmatprep.mubr.f32.mxu0 0.0
  %509 = vmatmul.mubr.f32.gmra.mxu0 %v421
  %v510 = vpop.f32.mrf.mxu0
  %v511 = vadd.f32 0.0, %v510
  %v512 = vpop.f32.mrf.mxu0
  %513 = vmatprep.mubr.f32.mxu0 0.0
  %514 = vmatmul.mubr.f32.gmra.mxu0 %v424
  %v515 = vpop.f32.mrf.mxu0
  %v516 = vadd.f32 0.0, %v515
  %v517 = vpop.f32.mrf.mxu0
  %518 = vmatprep.mubr.f32.mxu0 0.0
  %519 = vmatmul.mubr.f32.gmra.mxu0 %v427
  %v520 = vpop.f32.mrf.mxu0
  %v521 = vadd.f32 0.0, %v520
  %v522 = vpop.f32.mrf.mxu0
  %523 = vmatprep.mubr.f32.mxu0 0.0
  %524 = vmatmul.mubr.f32.gmra.mxu0 %v430
  %v525 = vpop.f32.mrf.mxu0
  %v526 = vadd.f32 0.0, %v525
  %v527 = vpop.f32.mrf.mxu0
  %528 = vmatprep.mubr.f32.mxu0 0.0
  %529 = vmatmul.mubr.f32.gmra.mxu0 %v433
  %v530 = vpop.f32.mrf.mxu0
  %v531 = vadd.f32 0.0, %v530
  %v532 = vpop.f32.mrf.mxu0
  %533 = vmatprep.mubr.f32.mxu0 0.0
  %534 = vmatmul.mubr.f32.gmra.mxu0 %v436
  %v535 = vpop.f32.mrf.mxu0
  %v536 = vadd.f32 0.0, %v535
  %v537 = vpop.f32.mrf.mxu0
  %538 = vmatprep.mubr.f32.mxu0 0.0
  %539 = vmatmul.mubr.f32.gmra.mxu0 %v439
  %v540 = vpop.f32.mrf.mxu0
  %v541 = vadd.f32 0.0, %v540
  %v542 = vpop.f32.mrf.mxu0
  %543 = vmatprep.mubr.f32.mxu0 0.0
  %544 = vmatmul.mubr.f32.gmra.mxu0 %v442
  %v545 = vpop.f32.mrf.mxu0
  %v546 = vadd.f32 0.0, %v545
  %v547 = vpop.f32.mrf.mxu0
  %548 = vdwg.mxu0
  %549 = vst.msk [vmem:[%s4] sm:$0xff] %vm49, %v511
  %550 = vst.msk [vmem:[%s4 + $0x8] sm:$0xff] %vm49, %v516
  %551 = vst.msk [vmem:[%s4 + $0x10] sm:$0xff] %vm49, %v521
  %552 = vst.msk [vmem:[%s4 + $0x18] sm:$0xff] %vm49, %v526
  %553 = vst.msk [vmem:[%s4 + $0x20] sm:$0xff] %vm49, %v531
  %554 = vst.msk [vmem:[%s4 + $0x28] sm:$0xff] %vm49, %v536
  %555 = vst.msk [vmem:[%s4 + $0x30] sm:$0xff] %vm49, %v541
  %556 = vst.msk [vmem:[%s4 + $0x38] sm:$0xff] %vm49, %v546
  %vm557 = vcmask 7168
  %558 = vst.msk [vmem:[%s5] sm:$0xff] %vm557, %v290
  %559 = vst.msk [vmem:[%s5 + $0x8] sm:$0xff] %vm557, %v305
  %560 = vst.msk [vmem:[%s5 + $0x10] sm:$0xff] %vm557, %v320
  %561 = vst.msk [vmem:[%s5 + $0x18] sm:$0xff] %vm557, %v335
  %562 = vst.msk [vmem:[%s5 + $0x20] sm:$0xff] %vm557, %v350
  %563 = vst.msk [vmem:[%s5 + $0x28] sm:$0xff] %vm557, %v365
  %564 = vst.msk [vmem:[%s5 + $0x30] sm:$0xff] %vm557, %v380
  %565 = vst.msk [vmem:[%s5 + $0x38] sm:$0xff] %vm557, %v395
  %v566 = vmax.f32 %v238, 0.0
  %v567 = vmax.f32 %v241, 0.0
  %v568 = vmax.f32 %v244, 0.0
  %v569 = vmax.f32 %v247, 0.0
  %v570 = vmax.f32 %v250, 0.0
  %v571 = vmax.f32 %v253, 0.0
  %v572 = vmax.f32 %v256, 0.0
  %v573 = vmax.f32 %v259, 0.0
  %574 = vst.msk [vmem:[%s6] sm:$0xff] %vm557, %v566
  %575 = vst.msk [vmem:[%s6 + $0x8] sm:$0xff] %vm557, %v567
  %576 = vst.msk [vmem:[%s6 + $0x10] sm:$0xff] %vm557, %v568
  %577 = vst.msk [vmem:[%s6 + $0x18] sm:$0xff] %vm557, %v569
  %578 = vst.msk [vmem:[%s6 + $0x20] sm:$0xff] %vm557, %v570
  %579 = vst.msk [vmem:[%s6 + $0x28] sm:$0xff] %vm557, %v571
  %580 = vst.msk [vmem:[%s6 + $0x30] sm:$0xff] %vm557, %v572
  %581 = vst.msk [vmem:[%s6 + $0x38] sm:$0xff] %vm557, %v573
  // Predicated region
  $region18: #{tpu_custom_call.1} parent=0 // pred_check
    _
  $region19: #{tpu_custom_call.1} parent=0 // pred_check_branch
    %583 = sbr.rel (0) target = $region21
  $region20: #{tpu_custom_call.1} parent=0 // pred_region
    _
  $region21: #{tpu_custom_call.1} parent=0 // pred_fallthru
    _
  // Predicated region
  $region22: #{tpu_custom_call.1} parent=0 // pred_check
    _
  $region23: #{tpu_custom_call.1} parent=0 // pred_check_branch
    %585 = sbr.rel (0) target = $region25
  $region24: #{tpu_custom_call.1} parent=0 // pred_region
    _
  $region25: #{tpu_custom_call.1} parent=0 // pred_fallthru
    _
  // Predicated region
  $region26: #{tpu_custom_call.1} parent=0 // pred_check
    _
  $region27: #{tpu_custom_call.1} parent=0 // pred_check_branch
    %587 = sbr.rel (0) target = $region29
  $region28: #{tpu_custom_call.1} parent=0 // pred_region
    _
  $region29: #{tpu_custom_call.1} parent=0 // pred_fallthru
    _
  // Predicated region
  $region30: #{tpu_custom_call.1} parent=0 // pred_check
    _
  $region31: #{tpu_custom_call.1} parent=0 // pred_check_branch
    %589 = sbr.rel (0) target = $region33
  $region32: #{tpu_custom_call.1} parent=0 // pred_region
    _
  $region33: #{tpu_custom_call.1} parent=0 // pred_fallthru
    _
  // Predicated region
  $region34: #{tpu_custom_call.1} parent=0 // pred_check
    _
  $region35: #{tpu_custom_call.1} parent=0 // pred_check_branch
    %591 = sbr.rel (0) target = $region37
  $region36: #{tpu_custom_call.1} parent=0 // pred_region
    _
  $region37: #{tpu_custom_call.1} parent=0 // pred_fallthru
    _
  // Predicated region
  $region38: #{tpu_custom_call.1} parent=0 // pred_check
    _
  $region39: #{tpu_custom_call.1} parent=0 // pred_check_branch
    %593 = sbr.rel (0) target = $region41
  $region40: #{tpu_custom_call.1} parent=0 // pred_region
    _
  $region41: #{tpu_custom_call.1} parent=0 // pred_fallthru
    _

</llo_original>
